<compile_context>
chip_gen: v7x
topology: tpu7x:2x2x1
jax: 0.10.0
libtpu: 0.0.40
codegen_flags: <defaults>
</compile_context>

<pallas_src>
import functools
import jax
import jax.numpy as jnp
from jax.experimental import pallas as pl
from jax.experimental.pallas import tpu as pltpu


def _round_up(x, m):
    return (x + m - 1) // m * m


def _model_kernel(*refs, is_training: bool, inv_keep: float):
    if is_training:
        (x_ref, keep_ref, wfc_ref, bfc_ref, wcls_ref, bcls_ref,
         h_ref, y_ref) = refs
    else:
        (x_ref, wfc_ref, bfc_ref, wcls_ref, bcls_ref,
         h_ref, y_ref) = refs
        keep_ref = None

    # fc + relu (MXU, bf16 operands, f32 accumulation)
    h = jnp.dot(x_ref[...], wfc_ref[...], preferred_element_type=jnp.float32)
    h = jnp.maximum(h + bfc_ref[...], 0.0)

    if is_training:
        # inverted dropout: keep mask is {0,1}; fold 1/(1-p) into the mask term.
        h = h * (keep_ref[...].astype(jnp.float32) * inv_keep)

    h_ref[...] = h.astype(h_ref.dtype)

    # classifier head (MXU)
    y = jnp.dot(h.astype(jnp.bfloat16), wcls_ref[...],
                preferred_element_type=jnp.float32)
    y_ref[...] = (y + bcls_ref[...]).astype(y_ref.dtype)


def model_forward(x, params, *, is_training=True, p=0.7, rng_key=None, block_m=256):
    """x: (..., F) float. Returns (h, logits) with shapes (..., F) and (..., C)."""
    wfc, bfc = params["wfc"], params["bfc"]
    wcls, bcls = params["wcls"], params["bcls"]

    lead = x.shape[:-1]
    F = x.shape[-1]
    C = wcls.shape[1]

    x2 = x.reshape(-1, F)
    N = x2.shape[0]

    # Lane-dense padding (128) for feature/class dims; row tile TM for the grid axis.
    Fp = _round_up(F, 128)
    Cp = _round_up(C, 128)
    TM = min(block_m, _round_up(N, 128))
    Np = _round_up(N, TM)
    grid_m = Np // TM

    bf16 = jnp.bfloat16
    xp = jnp.zeros((Np, Fp), bf16).at[:N, :F].set(x2.astype(bf16))
    wfc_p = jnp.zeros((Fp, Fp), bf16).at[:F, :F].set(wfc.astype(bf16))
    bfc_p = jnp.zeros((1, Fp), jnp.float32).at[0, :F].set(
        bfc.reshape(-1).astype(jnp.float32))
    wcls_p = jnp.zeros((Fp, Cp), bf16).at[:F, :C].set(wcls.astype(bf16))
    bcls_p = jnp.zeros((1, Cp), jnp.float32).at[0, :C].set(
        bcls.reshape(-1).astype(jnp.float32))

    row_spec = pl.BlockSpec((TM, Fp), lambda i: (i, 0))

    inputs = [xp]
    in_specs = [row_spec]

    if is_training:
        if rng_key is None:
            rng_key = jax.random.PRNGKey(0)
        keep = jax.random.bernoulli(rng_key, 1.0 - p, (Np, Fp)).astype(bf16)
        inputs.append(keep)
        in_specs.append(row_spec)

    inputs += [wfc_p, bfc_p, wcls_p, bcls_p]
    in_specs += [
        pl.BlockSpec((Fp, Fp), lambda i: (0, 0)),   # W_fc  (VMEM-resident)
        pl.BlockSpec((1, Fp), lambda i: (0, 0)),    # b_fc
        pl.BlockSpec((Fp, Cp), lambda i: (0, 0)),   # W_cls (VMEM-resident)
        pl.BlockSpec((1, Cp), lambda i: (0, 0)),    # b_cls
    ]

    out_shape = (
        jax.ShapeDtypeStruct((Np, Fp), jnp.float32),
        jax.ShapeDtypeStruct((Np, Cp), jnp.float32),
    )
    out_specs = (
        pl.BlockSpec((TM, Fp), lambda i: (i, 0)),
        pl.BlockSpec((TM, Cp), lambda i: (i, 0)),
    )

    flops = 2 * Np * Fp * Fp + 2 * Np * Fp * Cp
    bytes_accessed = (sum(int(a.size) * a.dtype.itemsize for a in inputs)
                      + Np * Fp * 4 + Np * Cp * 4)
    cost = pl.CostEstimate(flops=flops, transcendentals=0,
                           bytes_accessed=bytes_accessed)

    kernel = functools.partial(_model_kernel, is_training=is_training,
                               inv_keep=float(1.0 / (1.0 - p)))

    h_pad, y_pad = pl.pallas_call(
        kernel,
        out_shape=out_shape,
        grid=(grid_m,),
        in_specs=in_specs,
        out_specs=out_specs,
        compiler_params=pltpu.CompilerParams(
            dimension_semantics=("parallel",),
            vmem_limit_bytes=48 * 1024 * 1024,
        ),
        cost_estimate=cost,
    )(*inputs)

    h = h_pad[:N, :F].reshape(*lead, F)
    y = y_pad[:N, :C].reshape(*lead, C)
    return h, y


def _xavier_uniform(key, fan_in, fan_out):
    limit = (6.0 / (fan_in + fan_out)) ** 0.5
    return jax.random.uniform(key, (fan_in, fan_out), jnp.float32, -limit, limit)


def init_params(key, n_feature, n_class):
    k_fc, k_fc1, k_cls = jax.random.split(key, 3)
    return {
        # fc: Linear(n_feature, n_feature), xavier-uniform weight, zero bias
        "wfc": _xavier_uniform(k_fc, n_feature, n_feature),
        "bfc": jnp.zeros((1, n_feature), jnp.float32),
        # fc1 exists in the module __init__ but is unused in forward; kept for parity
        "wfc1": _xavier_uniform(k_fc1, n_feature, n_feature),
        "bfc1": jnp.zeros((1, n_feature), jnp.float32),
        # classifier: Linear(n_feature, n_class)
        "wcls": _xavier_uniform(k_cls, n_feature, n_class),
        "bcls": jnp.zeros((1, n_class), jnp.float32),
    }


if __name__ == "__main__":
    key = jax.random.PRNGKey(0)
    k_params, k_x, k_drop = jax.random.split(key, 3)

    batch, seq, n_feature, n_class = 2, 8, 32, 8
    params = init_params(k_params, n_feature, n_class)
    x = jax.random.normal(k_x, (batch, seq, n_feature), jnp.float32)

    # --- eval path (deterministic) vs pure-JAX reference using the same bf16 recipe ---
    h_ev, y_ev = model_forward(x, params, is_training=False)
    jax.block_until_ready((h_ev, y_ev))

    x2 = x.reshape(-1, n_feature)
    h_ref = jnp.maximum(
        jnp.dot(x2.astype(jnp.bfloat16), params["wfc"].astype(jnp.bfloat16),
                preferred_element_type=jnp.float32) + params["bfc"], 0.0)
    y_ref = jnp.dot(h_ref.astype(jnp.bfloat16), params["wcls"].astype(jnp.bfloat16),
                    preferred_element_type=jnp.float32) + params["bcls"]
    h_ref = h_ref.reshape(batch, seq, n_feature)
    y_ref = y_ref.reshape(batch, seq, n_class)
    assert jnp.allclose(h_ev, h_ref, atol=2e-2, rtol=2e-2), "h eval mismatch"
    assert jnp.allclose(y_ev, y_ref, atol=2e-2, rtol=2e-2), "y eval mismatch"

    # --- training path (dropout active) ---
    h_tr, y_tr = model_forward(x, params, is_training=True, rng_key=k_drop)
    jax.block_until_ready((h_tr, y_tr))
    assert h_tr.shape == (batch, seq, n_feature)
    assert y_tr.shape == (batch, seq, n_class)
    # every dropped-out activation must be exactly 0, every kept one scaled by 1/(1-p)
    scale = 1.0 / (1.0 - 0.7)
    kept = jnp.isclose(h_tr, h_ev * scale, atol=1e-4, rtol=1e-4)
    dropped = jnp.abs(h_tr) <= 1e-6
    assert bool(jnp.all(kept | dropped)), "dropout output is not {0, h/(1-p)}"

    print("KERNEL_OK")
</pallas_src>

<mosaic_0001>
module attributes {stable_mosaic.version = 11 : i64} {
  func.func @_model_kernel(%arg0: i32, %arg1: memref<128x128xbf16, #tpu.memory_space<vmem>>, %arg2: memref<128x128xbf16, #tpu.memory_space<vmem>>, %arg3: memref<1x128xf32, #tpu.memory_space<vmem>>, %arg4: memref<128x128xbf16, #tpu.memory_space<vmem>>, %arg5: memref<1x128xf32, #tpu.memory_space<vmem>>, %arg6: memref<128x128xf32, #tpu.memory_space<vmem>>, %arg7: memref<128x128xf32, #tpu.memory_space<vmem>>) attributes {dimension_semantics = [#tpu.dimension_semantics<parallel>], iteration_bounds = array<i64: 1>, scalar_prefetch = 0 : i64, scratch_operands = 0 : i64, tpu.core_type = #tpu.core_type<tc>, window_params = [{transform_indices = @transform_0, window_bounds = array<i64: 128, 128>}, {pipeline_mode = #tpu.pipeline_mode<synchronous>, transform_indices = @transform_1, window_bounds = array<i64: 128, 128>}, {pipeline_mode = #tpu.pipeline_mode<synchronous>, transform_indices = @transform_2, window_bounds = array<i64: 1, 128>}, {pipeline_mode = #tpu.pipeline_mode<synchronous>, transform_indices = @transform_3, window_bounds = array<i64: 128, 128>}, {pipeline_mode = #tpu.pipeline_mode<synchronous>, transform_indices = @transform_4, window_bounds = array<i64: 1, 128>}, {transform_indices = @transform_5, window_bounds = array<i64: 128, 128>}, {transform_indices = @transform_6, window_bounds = array<i64: 128, 128>}]} {
    %c0 = arith.constant 0 : index
    %c0_0 = arith.constant 0 : index
    %0 = vector.load %arg1[%c0, %c0_0] : memref<128x128xbf16, #tpu.memory_space<vmem>>, vector<128x128xbf16>
    %c0_1 = arith.constant 0 : index
    %c0_2 = arith.constant 0 : index
    %1 = vector.load %arg2[%c0_1, %c0_2] : memref<128x128xbf16, #tpu.memory_space<vmem>>, vector<128x128xbf16>
    %cst = arith.constant dense<0.000000e+00> : vector<128x128xf32>
    %2 = tpu.matmul %0, %1, %cst {dimension_numbers = #tpu.dot_dimension_numbers<[1], [0], [0], [1], [0, 0, 1, 1], [], []>} : vector<128x128xbf16>, vector<128x128xbf16>, vector<128x128xf32> -> vector<128x128xf32>
    %c0_3 = arith.constant 0 : index
    %c0_4 = arith.constant 0 : index
    %3 = vector.load %arg3[%c0_3, %c0_4] : memref<1x128xf32, #tpu.memory_space<vmem>>, vector<1x128xf32>
    %4 = vector.broadcast %3 : vector<1x128xf32> to vector<128x128xf32>
    %5 = arith.addf %2, %4 : vector<128x128xf32>
    %cst_5 = arith.constant 0.000000e+00 : f32
    %6 = vector.broadcast %cst_5 : f32 to vector<128x128xf32>
    %7 = arith.maximumf %5, %6 : vector<128x128xf32>
    %c0_6 = arith.constant 0 : index
    %c0_7 = arith.constant 0 : index
    %8 = vector.load %arg6[%c0_6, %c0_7] : memref<128x128xf32, #tpu.memory_space<vmem>>, vector<128x128xf32>
    tpu.vector_store %arg6[%c0_6, %c0_7], %7 {strides = array<i32>} : memref<128x128xf32, #tpu.memory_space<vmem>>, vector<128x128xf32>,
    %9 = arith.truncf %7 : vector<128x128xf32> to vector<128x128xbf16>
    %c0_8 = arith.constant 0 : index
    %c0_9 = arith.constant 0 : index
    %10 = vector.load %arg4[%c0_8, %c0_9] : memref<128x128xbf16, #tpu.memory_space<vmem>>, vector<128x128xbf16>
    %cst_10 = arith.constant dense<0.000000e+00> : vector<128x128xf32>
    %11 = tpu.matmul %9, %10, %cst_10 {dimension_numbers = #tpu.dot_dimension_numbers<[1], [0], [0], [1], [0, 0, 1, 1], [], []>} : vector<128x128xbf16>, vector<128x128xbf16>, vector<128x128xf32> -> vector<128x128xf32>
    %c0_11 = arith.constant 0 : index
    %c0_12 = arith.constant 0 : index
    %12 = vector.load %arg5[%c0_11, %c0_12] : memref<1x128xf32, #tpu.memory_space<vmem>>, vector<1x128xf32>
    %13 = vector.broadcast %12 : vector<1x128xf32> to vector<128x128xf32>
    %14 = arith.addf %11, %13 : vector<128x128xf32>
    %c0_13 = arith.constant 0 : index
    %c0_14 = arith.constant 0 : index
    %15 = vector.load %arg7[%c0_13, %c0_14] : memref<128x128xf32, #tpu.memory_space<vmem>>, vector<128x128xf32>
    tpu.vector_store %arg7[%c0_13, %c0_14], %14 {strides = array<i32>} : memref<128x128xf32, #tpu.memory_space<vmem>>, vector<128x128xf32>,
    return
  }
  func.func @transform_0(%arg0: i32) -> (i32, i32) {
    %c0_i32 = arith.constant 0 : i32
    %c0_i32_0 = arith.constant 0 : i32
    return %arg0, %c0_i32 : i32, i32
  }
  func.func @transform_1(%arg0: i32) -> (i32, i32) {
    %c0_i32 = arith.constant 0 : i32
    %c0_i32_0 = arith.constant 0 : i32
    %c0_i32_1 = arith.constant 0 : i32
    return %c0_i32, %c0_i32_0 : i32, i32
  }
  func.func @transform_2(%arg0: i32) -> (i32, i32) {
    %c0_i32 = arith.constant 0 : i32
    %c0_i32_0 = arith.constant 0 : i32
    %c0_i32_1 = arith.constant 0 : i32
    return %c0_i32, %c0_i32_0 : i32, i32
  }
  func.func @transform_3(%arg0: i32) -> (i32, i32) {
    %c0_i32 = arith.constant 0 : i32
    %c0_i32_0 = arith.constant 0 : i32
    %c0_i32_1 = arith.constant 0 : i32
    return %c0_i32, %c0_i32_0 : i32, i32
  }
  func.func @transform_4(%arg0: i32) -> (i32, i32) {
    %c0_i32 = arith.constant 0 : i32
    %c0_i32_0 = arith.constant 0 : i32
    %c0_i32_1 = arith.constant 0 : i32
    return %c0_i32, %c0_i32_0 : i32, i32
  }
  func.func @transform_5(%arg0: i32) -> (i32, i32) {
    %c0_i32 = arith.constant 0 : i32
    %c0_i32_0 = arith.constant 0 : i32
    return %arg0, %c0_i32 : i32, i32
  }
  func.func @transform_6(%arg0: i32) -> (i32, i32) {
    %c0_i32 = arith.constant 0 : i32
    %c0_i32_0 = arith.constant 0 : i32
    return %arg0, %c0_i32 : i32, i32
  }
}

</mosaic_0001>

<llo_original>
// kernel: tpu_custom_call.1
$region0: #{tpu_custom_call.1}
  #allocation0 [shape = 'u32[]', space=smem, size = 0x4, offset = 0x4, fixed_abs, tag = 'smem constant byte address 0x4 - core index']
  #allocation1 [shape = 'u32[144,128]{1,0:T(1,128)}', space=vmem, size = 0x12000, scoped, tag = 'internal scratch']
  %s0 = inlined_call_operand.hbm [shape: bf16[128,128], index: 0, kind: input, shape index: {}]
  %s1 = inlined_call_operand.hbm [shape: bf16[128,128], index: 1, kind: input, shape index: {}]
  %s2 = inlined_call_operand.vmem [shape: f32[1,128], index: 2, kind: input, shape index: {}]
  %s3 = inlined_call_operand.hbm [shape: bf16[128,128], index: 3, kind: input, shape index: {}]
  %s4 = inlined_call_operand.vmem [shape: f32[1,128], index: 4, kind: input, shape index: {}]
  %s5 = inlined_call_operand.hbm [shape: f32[128,128], index: 5, kind: output, shape index: {0}]
  %s6 = inlined_call_operand.hbm [shape: f32[128,128], index: 6, kind: output, shape index: {1}]
  %7 = xla_tuple %s5, %s6
  %s8 = sld [smem:[#allocation0]]
  $region50: #{tpu_custom_call.1} parent=0
    _
  %s10 = ssub.s32 1, %s8
  %s11 = scalar_select 0, %s10, %s8
  $region1: #{tpu_custom_call.1} parent=0
    #allocation2 [shape = 'u8[32768]{0}', space=vmem, size = 0x8000, scoped, tag = 'input window, operand 0, single buffered']
    #allocation3 [shape = 's32[1]{0}', space=sflag, size = 0x4, scoped, tag = 'scoped memory for tpu_custom_call.1']
    #allocation4 [shape = 's32[1]{0}', space=sflag, size = 0x4, scoped, tag = 'scoped memory for tpu_custom_call.1']
    #allocation5 [shape = 'u8[32768]{0}', space=vmem, size = 0x8000, scoped, tag = 'input window, operand 1, single buffered']
    #allocation6 [shape = 's32[1]{0}', space=sflag, size = 0x4, scoped, tag = 'scoped memory for tpu_custom_call.1']
    #allocation7 [shape = 'u8[32768]{0}', space=vmem, size = 0x8000, scoped, tag = 'input window, operand 3, single buffered']
    #allocation8 [shape = 'u8[65536]{0}', space=vmem, size = 0x10000, scoped, tag = 'output window, operand 0, single buffered']
    #allocation9 [shape = 'u8[65536]{0}', space=vmem, size = 0x10000, scoped, tag = 'output window, operand 1, single buffered']
    #allocation10 [shape = 's32[1]{0}', space=sflag, size = 0x4, scoped, tag = 'scoped memory for tpu_custom_call.1']
    %12 = vsyncpa [#allocation3], 0
    %13 = vsyncpa [#allocation6], 0
    %14 = vsyncpa [#allocation4], 0
    %15 = vsyncpa [#allocation10], 0
    // Predicated region
    $region2: #{tpu_custom_call.1} parent=1 // pred_check
      _
    $region3: #{tpu_custom_call.1} parent=1 // pred_check_branch
      %17 = sbr.rel (0) target = $region5
    $region4: #{tpu_custom_call.1} parent=1 // pred_region
      %s19 = ssub.s32 1024, 1024
      %20 = vsyncadd [#allocation3], %s19
      %s21 = sshll.u32 [#allocation2], 4
      %s22 = int_to_ptr.vmem [resolvable:$true] %s21
      %27 = dma.hbm_to_vmem [thread:$0]  %s0, 1024, %s22, [#allocation3], 64, 64, 4
    $region5: #{tpu_custom_call.1} parent=1 // pred_fallthru
      _
    // Predicated region
    $region6: #{tpu_custom_call.1} parent=1 // pred_check
      _
    $region7: #{tpu_custom_call.1} parent=1 // pred_check_branch
      %29 = sbr.rel (0) target = $region9
    $region8: #{tpu_custom_call.1} parent=1 // pred_region
      %s31 = ssub.s32 1024, 1024
      %32 = vsyncadd [#allocation6], %s31
      %s33 = sshll.u32 [#allocation5], 4
      %s34 = int_to_ptr.vmem [resolvable:$true] %s33
      %39 = dma.hbm_to_vmem [thread:$0]  %s1, 1024, %s34, [#allocation6], 64, 64, 4
    $region9: #{tpu_custom_call.1} parent=1 // pred_fallthru
      _
    // Predicated region
    $region10: #{tpu_custom_call.1} parent=1 // pred_check
      _
    $region11: #{tpu_custom_call.1} parent=1 // pred_check_branch
      %41 = sbr.rel (0) target = $region13
    $region12: #{tpu_custom_call.1} parent=1 // pred_region
      _
    $region13: #{tpu_custom_call.1} parent=1 // pred_fallthru
      _
    // Predicated region
    $region14: #{tpu_custom_call.1} parent=1 // pred_check
      _
    $region15: #{tpu_custom_call.1} parent=1 // pred_check_branch
      %43 = sbr.rel (0) target = $region17
    $region16: #{tpu_custom_call.1} parent=1 // pred_region
      %s45 = ssub.s32 1024, 1024
      %46 = vsyncadd [#allocation6], %s45
      %s47 = sshll.u32 [#allocation7], 4
      %s48 = int_to_ptr.vmem [resolvable:$true] %s47
      %53 = dma.hbm_to_vmem [thread:$0]  %s3, 1024, %s48, [#allocation6], 64, 64, 4
    $region17: #{tpu_custom_call.1} parent=1 // pred_fallthru
      _
    // Predicated region
    $region18: #{tpu_custom_call.1} parent=1 // pred_check
      _
    $region19: #{tpu_custom_call.1} parent=1 // pred_check_branch
      %55 = sbr.rel (0) target = $region21
    $region20: #{tpu_custom_call.1} parent=1 // pred_region
      _
    $region21: #{tpu_custom_call.1} parent=1 // pred_fallthru
      _
    // Predicated region
    $region22: #{tpu_custom_call.1} parent=1 // pred_check
      _
    $region23: #{tpu_custom_call.1} parent=1 // pred_check_branch
      %57 = sbr.rel (0) target = $region25
    $region24: #{tpu_custom_call.1} parent=1 // pred_region
      %58 = dma.done [#allocation3], 1024
    $region25: #{tpu_custom_call.1} parent=1 // pred_fallthru
      _
    // Predicated region
    $region26: #{tpu_custom_call.1} parent=1 // pred_check
      _
    $region27: #{tpu_custom_call.1} parent=1 // pred_check_branch
      %60 = sbr.rel (0) target = $region29
    $region28: #{tpu_custom_call.1} parent=1 // pred_region
      %61 = dma.done [#allocation6], 1024
    $region29: #{tpu_custom_call.1} parent=1 // pred_fallthru
      _
    // Predicated region
    $region30: #{tpu_custom_call.1} parent=1 // pred_check
      _
    $region31: #{tpu_custom_call.1} parent=1 // pred_check_branch
      %63 = sbr.rel (0) target = $region33
    $region32: #{tpu_custom_call.1} parent=1 // pred_region
      %64 = dma.done [#allocation6], 1024
    $region33: #{tpu_custom_call.1} parent=1 // pred_fallthru
      _
    %v66 = vld [vmem:[#allocation2] sm:$0xf]
    %v67 = vld [vmem:[#allocation2 + $0x4] sm:$0xf]
    %v68 = vld [vmem:[#allocation2 + $0x8] sm:$0xf]
    %v69 = vld [vmem:[#allocation2 + $0xc] sm:$0xf]
    %v70 = vld [vmem:[#allocation2 + $0x10] sm:$0xf]
    %v71 = vld [vmem:[#allocation2 + $0x14] sm:$0xf]
    %v72 = vld [vmem:[#allocation2 + $0x18] sm:$0xf]
    %v73 = vld [vmem:[#allocation2 + $0x1c] sm:$0xf]
    %v74 = vld [vmem:[#allocation2 + $0x20] sm:$0xf]
    %v75 = vld [vmem:[#allocation2 + $0x24] sm:$0xf]
    %v76 = vld [vmem:[#allocation2 + $0x28] sm:$0xf]
    %v77 = vld [vmem:[#allocation2 + $0x2c] sm:$0xf]
    %v78 = vld [vmem:[#allocation2 + $0x30] sm:$0xf]
    %v79 = vld [vmem:[#allocation2 + $0x34] sm:$0xf]
    %v80 = vld [vmem:[#allocation2 + $0x38] sm:$0xf]
    %v81 = vld [vmem:[#allocation2 + $0x3c] sm:$0xf]
    %v82 = vld [vmem:[#allocation5] sm:$0xf]
    %v83 = vld [vmem:[#allocation5 + $0x4] sm:$0xf]
    %v84 = vld [vmem:[#allocation5 + $0x8] sm:$0xf]
    %v85 = vld [vmem:[#allocation5 + $0xc] sm:$0xf]
    %v86 = vld [vmem:[#allocation5 + $0x10] sm:$0xf]
    %v87 = vld [vmem:[#allocation5 + $0x14] sm:$0xf]
    %v88 = vld [vmem:[#allocation5 + $0x18] sm:$0xf]
    %v89 = vld [vmem:[#allocation5 + $0x1c] sm:$0xf]
    %v90 = vld [vmem:[#allocation5 + $0x20] sm:$0xf]
    %v91 = vld [vmem:[#allocation5 + $0x24] sm:$0xf]
    %v92 = vld [vmem:[#allocation5 + $0x28] sm:$0xf]
    %v93 = vld [vmem:[#allocation5 + $0x2c] sm:$0xf]
    %v94 = vld [vmem:[#allocation5 + $0x30] sm:$0xf]
    %v95 = vld [vmem:[#allocation5 + $0x34] sm:$0xf]
    %v96 = vld [vmem:[#allocation5 + $0x38] sm:$0xf]
    %v97 = vld [vmem:[#allocation5 + $0x3c] sm:$0xf]
    %v98 = vld [vmem:[%s2] sm:$0x1]
    %v100 = vlaneseq
    %v101 = vshrl.u32 %v100, 7
    %v102 = vsub.s32 0, %v101
    %v103 = vrot.slane %v98, %v102
    %v121 = vunpack.c.l.b16 %v66
    %v122 = vunpack.c.l.b16 %v67
    %v123 = vunpack.c.l.b16 %v68
    %v124 = vunpack.c.l.b16 %v69
    %v125 = vunpack.c.l.b16 %v70
    %v126 = vunpack.c.l.b16 %v71
    %v127 = vunpack.c.l.b16 %v72
    %v128 = vunpack.c.l.b16 %v73
    %v129 = vunpack.c.l.b16 %v74
    %v130 = vunpack.c.l.b16 %v75
    %v131 = vunpack.c.l.b16 %v76
    %v132 = vunpack.c.l.b16 %v77
    %v133 = vunpack.c.l.b16 %v78
    %v134 = vunpack.c.l.b16 %v79
    %v135 = vunpack.c.l.b16 %v80
    %v136 = vunpack.c.l.b16 %v81
    %v137 = vpack.c.b16 %v122, %v121
    %v138 = vpack.c.b16 %v124, %v123
    %v139 = vpack.c.b16 %v126, %v125
    %v140 = vpack.c.b16 %v128, %v127
    %v141 = vpack.c.b16 %v130, %v129
    %v142 = vpack.c.b16 %v132, %v131
    %v143 = vpack.c.b16 %v134, %v133
    %v144 = vpack.c.b16 %v136, %v135
    %v169 = vunpack.c.l.b16 %v82
    %v170 = vunpack.c.l.b16 %v83
    %v171 = vunpack.c.l.b16 %v84
    %v172 = vunpack.c.l.b16 %v85
    %v173 = vunpack.c.l.b16 %v86
    %v174 = vunpack.c.l.b16 %v87
    %v175 = vunpack.c.l.b16 %v88
    %v176 = vunpack.c.l.b16 %v89
    %v177 = vunpack.c.l.b16 %v90
    %v178 = vunpack.c.l.b16 %v91
    %v179 = vunpack.c.l.b16 %v92
    %v180 = vunpack.c.l.b16 %v93
    %v181 = vunpack.c.l.b16 %v94
    %v182 = vunpack.c.l.b16 %v95
    %v183 = vunpack.c.l.b16 %v96
    %v184 = vunpack.c.l.b16 %v97
    %v185 = vpack.c.b16 %v170, %v169
    %v186 = vpack.c.b16 %v172, %v171
    %v187 = vpack.c.b16 %v174, %v173
    %v188 = vpack.c.b16 %v176, %v175
    %v189 = vpack.c.b16 %v178, %v177
    %v190 = vpack.c.b16 %v180, %v179
    %v191 = vpack.c.b16 %v182, %v181
    %v192 = vpack.c.b16 %v184, %v183
    %201 = vmatprep.subr.bf16.mxu0 0
    %202 = vmatpush1.bf16.msra.mxu0 %v185
    %203 = vmatprep.subr.bf16.mxu0 0
    %204 = vmatpush1.bf16.msra.mxu0 %v186
    %205 = vmatprep.subr.bf16.mxu0 0
    %206 = vmatpush1.bf16.msra.mxu0 %v187
    %207 = vmatprep.subr.bf16.mxu0 0
    %208 = vmatpush1.bf16.msra.mxu0 %v188
    %209 = vmatprep.subr.bf16.mxu0 0
    %210 = vmatpush1.bf16.msra.mxu0 %v189
    %211 = vmatprep.subr.bf16.mxu0 0
    %212 = vmatpush1.bf16.msra.mxu0 %v190
    %213 = vmatprep.subr.bf16.mxu0 0
    %214 = vmatpush1.bf16.msra.mxu0 %v191
    %215 = vmatprep.subr.bf16.mxu0 0
    %216 = vmatpush1.bf16.msra.mxu0 %v192
    %217 = vmatprep.subr.bf16.mxu0 0
    %218 = vmatpush1.bf16.msra.mxu0 0
    %219 = vmatprep.subr.bf16.mxu0 0
    %220 = vmatpush1.bf16.msra.mxu0 0
    %221 = vmatprep.subr.bf16.mxu0 0
    %222 = vmatpush1.bf16.msra.mxu0 0
    %223 = vmatprep.subr.bf16.mxu0 0
    %224 = vmatpush1.bf16.msra.mxu0 0
    %225 = vmatprep.subr.bf16.mxu0 0
    %226 = vmatpush1.bf16.msra.mxu0 0
    %227 = vmatprep.subr.bf16.mxu0 0
    %228 = vmatpush1.bf16.msra.mxu0 0
    %229 = vmatprep.subr.bf16.mxu0 0
    %230 = vmatpush1.bf16.msra.mxu0 0
    %231 = vmatprep.subr.bf16.mxu0 0
    %232 = vmatpush1.bf16.msra.mxu0 0
    %233 = vmatprep.mubr.bf16.mxu0 0
    %234 = vmatmul.mubr.bf16.gmra.mrb[0].mxu0 %v137
    %v235 = vpop.f32.mrb[0].mxu0
    %v236 = vadd.f32 %v103, %v235
    %v237 = vpop.f32.mrb[0].mxu0
    %v238 = vpop.f32.mrb[0].mxu0
    %v239 = vadd.f32 %v103, %v238
    %v240 = vpop.f32.mrb[0].mxu0
    %241 = vmatprep.mubr.bf16.mxu0 0
    %242 = vmatmul.mubr.bf16.gmra.mrb[0].mxu0 %v138
    %v243 = vpop.f32.mrb[0].mxu0
    %v244 = vadd.f32 %v103, %v243
    %v245 = vpop.f32.mrb[0].mxu0
    %v246 = vpop.f32.mrb[0].mxu0
    %v247 = vadd.f32 %v103, %v246
    %v248 = vpop.f32.mrb[0].mxu0
    %249 = vmatprep.mubr.bf16.mxu0 0
    %250 = vmatmul.mubr.bf16.gmra.mrb[0].mxu0 %v139
    %v251 = vpop.f32.mrb[0].mxu0
    %v252 = vadd.f32 %v103, %v251
    %v253 = vpop.f32.mrb[0].mxu0
    %v254 = vpop.f32.mrb[0].mxu0
    %v255 = vadd.f32 %v103, %v254
    %v256 = vpop.f32.mrb[0].mxu0
    %257 = vmatprep.mubr.bf16.mxu0 0
    %258 = vmatmul.mubr.bf16.gmra.mrb[0].mxu0 %v140
    %v259 = vpop.f32.mrb[0].mxu0
    %v260 = vadd.f32 %v103, %v259
    %v261 = vpop.f32.mrb[0].mxu0
    %v262 = vpop.f32.mrb[0].mxu0
    %v263 = vadd.f32 %v103, %v262
    %v264 = vpop.f32.mrb[0].mxu0
    %265 = vmatprep.mubr.bf16.mxu0 0
    %266 = vmatmul.mubr.bf16.gmra.mrb[0].mxu0 %v141
    %v267 = vpop.f32.mrb[0].mxu0
    %v268 = vadd.f32 %v103, %v267
    %v269 = vpop.f32.mrb[0].mxu0
    %v270 = vpop.f32.mrb[0].mxu0
    %v271 = vadd.f32 %v103, %v270
    %v272 = vpop.f32.mrb[0].mxu0
    %273 = vmatprep.mubr.bf16.mxu0 0
    %274 = vmatmul.mubr.bf16.gmra.mrb[0].mxu0 %v142
    %v275 = vpop.f32.mrb[0].mxu0
    %v276 = vadd.f32 %v103, %v275
    %v277 = vpop.f32.mrb[0].mxu0
    %v278 = vpop.f32.mrb[0].mxu0
    %v279 = vadd.f32 %v103, %v278
    %v280 = vpop.f32.mrb[0].mxu0
    %281 = vmatprep.mubr.bf16.mxu0 0
    %282 = vmatmul.mubr.bf16.gmra.mrb[0].mxu0 %v143
    %v283 = vpop.f32.mrb[0].mxu0
    %v284 = vadd.f32 %v103, %v283
    %v285 = vpop.f32.mrb[0].mxu0
    %v286 = vpop.f32.mrb[0].mxu0
    %v287 = vadd.f32 %v103, %v286
    %v288 = vpop.f32.mrb[0].mxu0
    %289 = vmatprep.mubr.bf16.mxu0 0
    %290 = vmatmul.mubr.bf16.gmra.mrb[0].mxu0 %v144
    %v291 = vpop.f32.mrb[0].mxu0
    %v292 = vadd.f32 %v103, %v291
    %v293 = vpop.f32.mrb[0].mxu0
    %v294 = vpop.f32.mrb[0].mxu0
    %v295 = vadd.f32 %v103, %v294
    %v296 = vpop.f32.mrb[0].mxu0
    %297 = vdwg.mxu0
    %v298 = vmax.f32 %v236, 0.0
    %v299 = vmax.f32 %v239, 0.0
    %v300 = vmax.f32 %v244, 0.0
    %v301 = vmax.f32 %v247, 0.0
    %v302 = vmax.f32 %v252, 0.0
    %v303 = vmax.f32 %v255, 0.0
    %v304 = vmax.f32 %v260, 0.0
    %v305 = vmax.f32 %v263, 0.0
    %v306 = vmax.f32 %v268, 0.0
    %v307 = vmax.f32 %v271, 0.0
    %v308 = vmax.f32 %v276, 0.0
    %v309 = vmax.f32 %v279, 0.0
    %v310 = vmax.f32 %v284, 0.0
    %v311 = vmax.f32 %v287, 0.0
    %v312 = vmax.f32 %v292, 0.0
    %v313 = vmax.f32 %v295, 0.0
    %314 = vst [vmem:[#allocation8] sm:$0xff] %v298
    %315 = vst [vmem:[#allocation8 + $0x8] sm:$0xff] %v299
    %316 = vst [vmem:[#allocation8 + $0x10] sm:$0xff] %v300
    %317 = vst [vmem:[#allocation8 + $0x18] sm:$0xff] %v301
    %318 = vst [vmem:[#allocation8 + $0x20] sm:$0xff] %v302
    %319 = vst [vmem:[#allocation8 + $0x28] sm:$0xff] %v303
    %320 = vst [vmem:[#allocation8 + $0x30] sm:$0xff] %v304
    %321 = vst [vmem:[#allocation8 + $0x38] sm:$0xff] %v305
    %322 = vst [vmem:[#allocation8 + $0x40] sm:$0xff] %v306
    %323 = vst [vmem:[#allocation8 + $0x48] sm:$0xff] %v307
    %324 = vst [vmem:[#allocation8 + $0x50] sm:$0xff] %v308
    %325 = vst [vmem:[#allocation8 + $0x58] sm:$0xff] %v309
    %326 = vst [vmem:[#allocation8 + $0x60] sm:$0xff] %v310
    %327 = vst [vmem:[#allocation8 + $0x68] sm:$0xff] %v311
    %328 = vst [vmem:[#allocation8 + $0x70] sm:$0xff] %v312
    %329 = vst [vmem:[#allocation8 + $0x78] sm:$0xff] %v313
    %v330 = vpack.c.bf16 %v299, %v298
    %v331 = vpack.c.bf16 %v301, %v300
    %v332 = vpack.c.bf16 %v303, %v302
    %v333 = vpack.c.bf16 %v305, %v304
    %v334 = vpack.c.bf16 %v307, %v306
    %v335 = vpack.c.bf16 %v309, %v308
    %v336 = vpack.c.bf16 %v311, %v310
    %v337 = vpack.c.bf16 %v313, %v312
    %v338 = vld [vmem:[#allocation7] sm:$0xf]
    %v339 = vld [vmem:[#allocation7 + $0x4] sm:$0xf]
    %v340 = vld [vmem:[#allocation7 + $0x8] sm:$0xf]
    %v341 = vld [vmem:[#allocation7 + $0xc] sm:$0xf]
    %v342 = vld [vmem:[#allocation7 + $0x10] sm:$0xf]
    %v343 = vld [vmem:[#allocation7 + $0x14] sm:$0xf]
    %v344 = vld [vmem:[#allocation7 + $0x18] sm:$0xf]
    %v345 = vld [vmem:[#allocation7 + $0x1c] sm:$0xf]
    %v346 = vld [vmem:[#allocation7 + $0x20] sm:$0xf]
    %v347 = vld [vmem:[#allocation7 + $0x24] sm:$0xf]
    %v348 = vld [vmem:[#allocation7 + $0x28] sm:$0xf]
    %v349 = vld [vmem:[#allocation7 + $0x2c] sm:$0xf]
    %v350 = vld [vmem:[#allocation7 + $0x30] sm:$0xf]
    %v351 = vld [vmem:[#allocation7 + $0x34] sm:$0xf]
    %v352 = vld [vmem:[#allocation7 + $0x38] sm:$0xf]
    %v353 = vld [vmem:[#allocation7 + $0x3c] sm:$0xf]
    %v354 = vld [vmem:[%s4] sm:$0x1]
    %v356 = vlaneseq
    %v357 = vshrl.u32 %v356, 7
    %v358 = vsub.s32 0, %v357
    %v359 = vrot.slane %v354, %v358
    %v377 = vunpack.c.l.b16 %v338
    %v378 = vunpack.c.l.b16 %v339
    %v379 = vunpack.c.l.b16 %v340
    %v380 = vunpack.c.l.b16 %v341
    %v381 = vunpack.c.l.b16 %v342
    %v382 = vunpack.c.l.b16 %v343
    %v383 = vunpack.c.l.b16 %v344
    %v384 = vunpack.c.l.b16 %v345
    %v385 = vunpack.c.l.b16 %v346
    %v386 = vunpack.c.l.b16 %v347
    %v387 = vunpack.c.l.b16 %v348
    %v388 = vunpack.c.l.b16 %v349
    %v389 = vunpack.c.l.b16 %v350
    %v390 = vunpack.c.l.b16 %v351
    %v391 = vunpack.c.l.b16 %v352
    %v392 = vunpack.c.l.b16 %v353
    %v393 = vpack.c.b16 %v378, %v377
    %v394 = vpack.c.b16 %v380, %v379
    %v395 = vpack.c.b16 %v382, %v381
    %v396 = vpack.c.b16 %v384, %v383
    %v397 = vpack.c.b16 %v386, %v385
    %v398 = vpack.c.b16 %v388, %v387
    %v399 = vpack.c.b16 %v390, %v389
    %v400 = vpack.c.b16 %v392, %v391
    %409 = vmatprep.subr.bf16.mxu0 0
    %410 = vmatpush1.bf16.msra.mxu0 %v393
    %411 = vmatprep.subr.bf16.mxu0 0
    %412 = vmatpush1.bf16.msra.mxu0 %v394
    %413 = vmatprep.subr.bf16.mxu0 0
    %414 = vmatpush1.bf16.msra.mxu0 %v395
    %415 = vmatprep.subr.bf16.mxu0 0
    %416 = vmatpush1.bf16.msra.mxu0 %v396
    %417 = vmatprep.subr.bf16.mxu0 0
    %418 = vmatpush1.bf16.msra.mxu0 %v397
    %419 = vmatprep.subr.bf16.mxu0 0
    %420 = vmatpush1.bf16.msra.mxu0 %v398
    %421 = vmatprep.subr.bf16.mxu0 0
    %422 = vmatpush1.bf16.msra.mxu0 %v399
    %423 = vmatprep.subr.bf16.mxu0 0
    %424 = vmatpush1.bf16.msra.mxu0 %v400
    %425 = vmatprep.subr.bf16.mxu0 0
    %426 = vmatpush1.bf16.msra.mxu0 0
    %427 = vmatprep.subr.bf16.mxu0 0
    %428 = vmatpush1.bf16.msra.mxu0 0
    %429 = vmatprep.subr.bf16.mxu0 0
    %430 = vmatpush1.bf16.msra.mxu0 0
    %431 = vmatprep.subr.bf16.mxu0 0
    %432 = vmatpush1.bf16.msra.mxu0 0
    %433 = vmatprep.subr.bf16.mxu0 0
    %434 = vmatpush1.bf16.msra.mxu0 0
    %435 = vmatprep.subr.bf16.mxu0 0
    %436 = vmatpush1.bf16.msra.mxu0 0
    %437 = vmatprep.subr.bf16.mxu0 0
    %438 = vmatpush1.bf16.msra.mxu0 0
    %439 = vmatprep.subr.bf16.mxu0 0
    %440 = vmatpush1.bf16.msra.mxu0 0
    %441 = vmatprep.mubr.bf16.mxu0 0
    %442 = vmatmul.mubr.bf16.gmra.mrb[0].mxu0 %v330
    %v443 = vpop.f32.mrb[0].mxu0
    %v444 = vadd.f32 %v359, %v443
    %v445 = vpop.f32.mrb[0].mxu0
    %v446 = vpop.f32.mrb[0].mxu0
    %v447 = vadd.f32 %v359, %v446
    %v448 = vpop.f32.mrb[0].mxu0
    %449 = vmatprep.mubr.bf16.mxu0 0
    %450 = vmatmul.mubr.bf16.gmra.mrb[0].mxu0 %v331
    %v451 = vpop.f32.mrb[0].mxu0
    %v452 = vadd.f32 %v359, %v451
    %v453 = vpop.f32.mrb[0].mxu0
    %v454 = vpop.f32.mrb[0].mxu0
    %v455 = vadd.f32 %v359, %v454
    %v456 = vpop.f32.mrb[0].mxu0
    %457 = vmatprep.mubr.bf16.mxu0 0
    %458 = vmatmul.mubr.bf16.gmra.mrb[0].mxu0 %v332
    %v459 = vpop.f32.mrb[0].mxu0
    %v460 = vadd.f32 %v359, %v459
    %v461 = vpop.f32.mrb[0].mxu0
    %v462 = vpop.f32.mrb[0].mxu0
    %v463 = vadd.f32 %v359, %v462
    %v464 = vpop.f32.mrb[0].mxu0
    %465 = vmatprep.mubr.bf16.mxu0 0
    %466 = vmatmul.mubr.bf16.gmra.mrb[0].mxu0 %v333
    %v467 = vpop.f32.mrb[0].mxu0
    %v468 = vadd.f32 %v359, %v467
    %v469 = vpop.f32.mrb[0].mxu0
    %v470 = vpop.f32.mrb[0].mxu0
    %v471 = vadd.f32 %v359, %v470
    %v472 = vpop.f32.mrb[0].mxu0
    %473 = vmatprep.mubr.bf16.mxu0 0
    %474 = vmatmul.mubr.bf16.gmra.mrb[0].mxu0 %v334
    %v475 = vpop.f32.mrb[0].mxu0
    %v476 = vadd.f32 %v359, %v475
    %v477 = vpop.f32.mrb[0].mxu0
    %v478 = vpop.f32.mrb[0].mxu0
    %v479 = vadd.f32 %v359, %v478
    %v480 = vpop.f32.mrb[0].mxu0
    %481 = vmatprep.mubr.bf16.mxu0 0
    %482 = vmatmul.mubr.bf16.gmra.mrb[0].mxu0 %v335
    %v483 = vpop.f32.mrb[0].mxu0
    %v484 = vadd.f32 %v359, %v483
    %v485 = vpop.f32.mrb[0].mxu0
    %v486 = vpop.f32.mrb[0].mxu0
    %v487 = vadd.f32 %v359, %v486
    %v488 = vpop.f32.mrb[0].mxu0
    %489 = vmatprep.mubr.bf16.mxu0 0
    %490 = vmatmul.mubr.bf16.gmra.mrb[0].mxu0 %v336
    %v491 = vpop.f32.mrb[0].mxu0
    %v492 = vadd.f32 %v359, %v491
    %v493 = vpop.f32.mrb[0].mxu0
    %v494 = vpop.f32.mrb[0].mxu0
    %v495 = vadd.f32 %v359, %v494
    %v496 = vpop.f32.mrb[0].mxu0
    %497 = vmatprep.mubr.bf16.mxu0 0
    %498 = vmatmul.mubr.bf16.gmra.mrb[0].mxu0 %v337
    %v499 = vpop.f32.mrb[0].mxu0
    %v500 = vadd.f32 %v359, %v499
    %v501 = vpop.f32.mrb[0].mxu0
    %v502 = vpop.f32.mrb[0].mxu0
    %v503 = vadd.f32 %v359, %v502
    %v504 = vpop.f32.mrb[0].mxu0
    %505 = vdwg.mxu0
    %506 = vst [vmem:[#allocation9] sm:$0xff] %v444
    %507 = vst [vmem:[#allocation9 + $0x8] sm:$0xff] %v447
    %508 = vst [vmem:[#allocation9 + $0x10] sm:$0xff] %v452
    %509 = vst [vmem:[#allocation9 + $0x18] sm:$0xff] %v455
    %510 = vst [vmem:[#allocation9 + $0x20] sm:$0xff] %v460
    %511 = vst [vmem:[#allocation9 + $0x28] sm:$0xff] %v463
    %512 = vst [vmem:[#allocation9 + $0x30] sm:$0xff] %v468
    %513 = vst [vmem:[#allocation9 + $0x38] sm:$0xff] %v471
    %514 = vst [vmem:[#allocation9 + $0x40] sm:$0xff] %v476
    %515 = vst [vmem:[#allocation9 + $0x48] sm:$0xff] %v479
    %516 = vst [vmem:[#allocation9 + $0x50] sm:$0xff] %v484
    %517 = vst [vmem:[#allocation9 + $0x58] sm:$0xff] %v487
    %518 = vst [vmem:[#allocation9 + $0x60] sm:$0xff] %v492
    %519 = vst [vmem:[#allocation9 + $0x68] sm:$0xff] %v495
    %520 = vst [vmem:[#allocation9 + $0x70] sm:$0xff] %v500
    %521 = vst [vmem:[#allocation9 + $0x78] sm:$0xff] %v503
    // Predicated region
    $region34: #{tpu_custom_call.1} parent=1 // pred_check
      _
    $region35: #{tpu_custom_call.1} parent=1 // pred_check_branch
      %523 = sbr.rel (0) target = $region37
    $region36: #{tpu_custom_call.1} parent=1 // pred_region
      %s525 = ssub.s32 2048, 2048
      %526 = vsyncadd [#allocation4], %s525
      %s527 = sshll.u32 [#allocation8], 4
      %s528 = int_to_ptr.vmem [resolvable:$true] %s527
      %533 = dma.vmem_to_hbm [thread:$0]  %s528, 2048, %s5, [#allocation4], 128, 128, 8
    $region37: #{tpu_custom_call.1} parent=1 // pred_fallthru
      _
    // Predicated region
    $region38: #{tpu_custom_call.1} parent=1 // pred_check
      _
    $region39: #{tpu_custom_call.1} parent=1 // pred_check_branch
      %535 = sbr.rel (0) target = $region41
    $region40: #{tpu_custom_call.1} parent=1 // pred_region
      %s537 = ssub.s32 2048, 2048
      %538 = vsyncadd [#allocation10], %s537
      %s539 = sshll.u32 [#allocation9], 4
      %s540 = int_to_ptr.vmem [resolvable:$true] %s539
      %545 = dma.vmem_to_hbm [thread:$0]  %s540, 2048, %s6, [#allocation10], 128, 128, 8
    $region41: #{tpu_custom_call.1} parent=1 // pred_fallthru
      _
    // Predicated region
    $region42: #{tpu_custom_call.1} parent=1 // pred_check
      _
    $region43: #{tpu_custom_call.1} parent=1 // pred_check_branch
      %547 = sbr.rel (0) target = $region45
    $region44: #{tpu_custom_call.1} parent=1 // pred_region
      %548 = dma.done [#allocation4], 2048
    $region45: #{tpu_custom_call.1} parent=1 // pred_fallthru
      _
    // Predicated region
    $region46: #{tpu_custom_call.1} parent=1 // pred_check
      _
    $region47: #{tpu_custom_call.1} parent=1 // pred_check_branch
      %550 = sbr.rel (0) target = $region49
    $region48: #{tpu_custom_call.1} parent=1 // pred_region
      %551 = dma.done [#allocation10], 2048
    $region49: #{tpu_custom_call.1} parent=1 // pred_fallthru
      _
    %552 = vsyncpa [#allocation3], 1
    %553 = vsyncpa [#allocation6], 1
    %554 = vsyncpa [#allocation4], 1
    %555 = vsyncpa [#allocation10], 1

</llo_original>
